<compile_context>
chip_gen: v7x
topology: tpu7x:2x2x1
jax: 0.10.0
libtpu: 0.0.40
codegen_flags: <defaults>
</compile_context>

<pallas_src>
import jax
import jax.numpy as jnp
from jax.experimental import pallas as pl
from jax.experimental.pallas import tpu as pltpu


def _locked_dropout_kernel(x_ref, m_ref, o_ref):
    # x_ref: (NB, TS, F); m_ref: (NB, 1, F) pre-scaled mask in x.dtype.
    # The mask broadcasts over the seq axis, so every time step in this block
    # sees exactly the same per-(batch, feature) mask row ("locked" property).
    o_ref[...] = x_ref[...] * m_ref[...]


def _choose_tiles(B, S, F, itemsize):
    """Pick (NB, TS) so one block is ~<=3 MiB.

    Input and output blocks are double-buffered (4 live block buffers), so
    total VMEM stays ~<=12-13 MiB: under v5e's 16 MiB default scoped limit,
    v6e's 32 MiB default, and v7x's 64 MiB physical VMEM. Small shapes pack
    several batch rows per block; long sequences tile the seq axis with
    sublane-aligned (multiple-of-8) tiles.
    """
    target = 3 * 1024 * 1024
    row_bytes = F * itemsize
    seq_bytes = S * row_bytes
    if seq_bytes <= target:
        TS = S
        NB = max(1, min(B, target // max(seq_bytes, 1)))
    else:
        NB = 1
        TS = max(8, (target // row_bytes) // 8 * 8)
        TS = min(TS, S)
    return NB, TS


def locked_dropout(x, key, *, dropout=0.5, training=True):
    """x: [batch, seq_len, feature]. Same forward semantics as the PyTorch module."""
    if (not training) or dropout == 0.0:
        return x

    B, S, F = x.shape
    keep_prob = 1.0 - float(dropout)
    itemsize = x.dtype.itemsize

    # One Bernoulli(keep_prob) draw per (batch, feature), scaled by 1/keep_prob.
    # TODO(synk): pltpu.prng_seed / prng_random_bits would let the mask be drawn
    # in-kernel, but those primitives have no CPU/interpret lowering, so the
    # tiny [B, 1, F] mask is sampled with jax.random in the wrapper instead.
    keep = jax.random.bernoulli(key, p=keep_prob, shape=(B, 1, F))
    mask = (keep.astype(jnp.float32) * (1.0 / keep_prob)).astype(x.dtype)

    NB, TS = _choose_tiles(B, S, F, itemsize)
    grid = (pl.cdiv(B, NB), pl.cdiv(S, TS))

    cost = pl.CostEstimate(
        flops=B * S * F,
        transcendentals=0,
        bytes_accessed=2 * B * S * F * itemsize + B * F * itemsize,
    )

    return pl.pallas_call(
        _locked_dropout_kernel,
        out_shape=jax.ShapeDtypeStruct((B, S, F), x.dtype),
        grid=grid,
        in_specs=[
            pl.BlockSpec((NB, TS, F), lambda b, s: (b, s, 0)),
            pl.BlockSpec((NB, 1, F), lambda b, s: (b, 0, 0)),
        ],
        out_specs=pl.BlockSpec((NB, TS, F), lambda b, s: (b, s, 0)),
        compiler_params=pltpu.CompilerParams(
            # Every (batch-tile, seq-tile) block is independent; both axes
            # parallel so v7x's two TensorCores split the work.
            dimension_semantics=("parallel", "parallel"),
        ),
        cost_estimate=cost,
    )(x, mask)


if __name__ == "__main__":
    root = jax.random.PRNGKey(0)
    kx, kd = jax.random.split(root)

    B, S, F = 2, 8, 128
    p = 0.5
    x = jax.random.normal(kx, (B, S, F), dtype=jnp.float32)

    y = jax.block_until_ready(locked_dropout(x, kd, dropout=p, training=True))

    # --- sanity checks on the locked-dropout semantics -----------------------
    assert y.shape == x.shape and y.dtype == x.dtype

    # Every kept entry equals x / (1 - p); dropped entries are exactly 0.
    scale = 1.0 / (1.0 - p)
    kept = jnp.abs(y) > 0
    assert bool(jnp.allclose(jnp.where(kept, y, 0.0),
                             jnp.where(kept, x * scale, 0.0),
                             rtol=1e-6, atol=1e-6))

    # The mask must be identical across the seq axis ("locked").
    ratio = jnp.where(jnp.abs(x) > 0, y / jnp.where(jnp.abs(x) > 0, x, 1.0), 0.0)
    assert bool(jnp.all(jnp.abs(ratio - ratio[:, :1, :]) < 1e-5))

    # Eval mode is identity.
    y_eval = jax.block_until_ready(locked_dropout(x, kd, dropout=p, training=False))
    assert bool(jnp.array_equal(y_eval, x))

    print("KERNEL_OK")
</pallas_src>

<mosaic_0001>
module attributes {stable_mosaic.version = 11 : i64} {
  func.func @_locked_dropout_kernel(%arg0: i32, %arg1: i32, %arg2: memref<2x8x128xf32, #tpu.memory_space<vmem>>, %arg3: memref<2x1x128xf32, #tpu.memory_space<vmem>>, %arg4: memref<2x8x128xf32, #tpu.memory_space<vmem>>) attributes {dimension_semantics = [#tpu.dimension_semantics<parallel>, #tpu.dimension_semantics<parallel>], iteration_bounds = array<i64: 1, 1>, scalar_prefetch = 0 : i64, scratch_operands = 0 : i64, tpu.core_type = #tpu.core_type<tc>, window_params = [{transform_indices = @transform_0, window_bounds = array<i64: 2, 8, 128>}, {transform_indices = @transform_1, window_bounds = array<i64: 2, 1, 128>}, {transform_indices = @transform_2, window_bounds = array<i64: 2, 8, 128>}]} {
    %c0 = arith.constant 0 : index
    %c0_0 = arith.constant 0 : index
    %c0_1 = arith.constant 0 : index
    %0 = vector.load %arg2[%c0, %c0_0, %c0_1] : memref<2x8x128xf32, #tpu.memory_space<vmem>>, vector<2x8x128xf32>
    %c0_2 = arith.constant 0 : index
    %c0_3 = arith.constant 0 : index
    %c0_4 = arith.constant 0 : index
    %1 = vector.load %arg3[%c0_2, %c0_3, %c0_4] : memref<2x1x128xf32, #tpu.memory_space<vmem>>, vector<2x1x128xf32>
    %2 = vector.broadcast %1 : vector<2x1x128xf32> to vector<2x8x128xf32>
    %3 = arith.mulf %0, %2 : vector<2x8x128xf32>
    %c0_5 = arith.constant 0 : index
    %c0_6 = arith.constant 0 : index
    %c0_7 = arith.constant 0 : index
    %4 = vector.load %arg4[%c0_5, %c0_6, %c0_7] : memref<2x8x128xf32, #tpu.memory_space<vmem>>, vector<2x8x128xf32>
    tpu.vector_store %arg4[%c0_5, %c0_6, %c0_7], %3 {strides = array<i32>} : memref<2x8x128xf32, #tpu.memory_space<vmem>>, vector<2x8x128xf32>,
    return
  }
  func.func @transform_0(%arg0: i32, %arg1: i32) -> (i32, i32, i32) {
    %c0_i32 = arith.constant 0 : i32
    %c0_i32_0 = arith.constant 0 : i32
    return %arg0, %arg1, %c0_i32 : i32, i32, i32
  }
  func.func @transform_1(%arg0: i32, %arg1: i32) -> (i32, i32, i32) {
    %c0_i32 = arith.constant 0 : i32
    %c0_i32_0 = arith.constant 0 : i32
    %c0_i32_1 = arith.constant 0 : i32
    return %arg0, %c0_i32, %c0_i32_0 : i32, i32, i32
  }
  func.func @transform_2(%arg0: i32, %arg1: i32) -> (i32, i32, i32) {
    %c0_i32 = arith.constant 0 : i32
    %c0_i32_0 = arith.constant 0 : i32
    return %arg0, %arg1, %c0_i32 : i32, i32, i32
  }
}

</mosaic_0001>

<llo_original>
// kernel: tpu_custom_call.1
$region0: #{tpu_custom_call.1}
  #allocation0 [shape = 'u32[]', space=smem, size = 0x4, offset = 0x4, fixed_abs, tag = 'smem constant byte address 0x4 - core index']
  #allocation1 [shape = 'u32[144,128]{1,0:T(1,128)}', space=vmem, size = 0x12000, scoped, tag = 'internal scratch']
  %s0 = inlined_call_operand.hbm [shape: f32[2,8,128], index: 0, kind: input, shape index: {}]
  %s1 = inlined_call_operand.vmem [shape: f32[2,1,128], index: 1, kind: input, shape index: {}]
  %s2 = inlined_call_operand.hbm [shape: f32[2,8,128], index: 2, kind: output, shape index: {}]
  %s3 = sld [smem:[#allocation0]]
  $region22: #{tpu_custom_call.1} parent=0
    _
  %s5 = ssub.s32 1, %s3
  %s6 = scalar_select 0, %s5, %s3
  $region1: #{tpu_custom_call.1} parent=0
    #allocation2 [shape = 'u8[8192]{0}', space=vmem, size = 0x2000, scoped, tag = 'input window, operand 0, single buffered']
    #allocation3 [shape = 's32[1]{0}', space=sflag, size = 0x4, scoped, tag = 'scoped memory for tpu_custom_call.1']
    #allocation4 [shape = 's32[1]{0}', space=sflag, size = 0x4, scoped, tag = 'scoped memory for tpu_custom_call.1']
    #allocation5 [shape = 'u8[8192]{0}', space=vmem, size = 0x2000, scoped, tag = 'output window, operand 0, single buffered']
    %7 = vsyncpa [#allocation3], 0
    %8 = vsyncpa [#allocation4], 0
    // Predicated region
    $region2: #{tpu_custom_call.1} parent=1 // pred_check
      _
    $region3: #{tpu_custom_call.1} parent=1 // pred_check_branch
      %10 = sbr.rel (0) target = $region5
    $region4: #{tpu_custom_call.1} parent=1 // pred_region
      %s12 = ssub.s32 256, 256
      %13 = vsyncadd [#allocation3], %s12
      %s14 = sshll.u32 [#allocation2], 4
      %s15 = int_to_ptr.vmem [resolvable:$true] %s14
      %20 = dma.hbm_to_vmem [thread:$0]  %s0, 256, %s15, [#allocation3], 128, 128, 8
    $region5: #{tpu_custom_call.1} parent=1 // pred_fallthru
      _
    // Predicated region
    $region6: #{tpu_custom_call.1} parent=1 // pred_check
      _
    $region7: #{tpu_custom_call.1} parent=1 // pred_check_branch
      %22 = sbr.rel (0) target = $region9
    $region8: #{tpu_custom_call.1} parent=1 // pred_region
      _
    $region9: #{tpu_custom_call.1} parent=1 // pred_fallthru
      _
    // Predicated region
    $region10: #{tpu_custom_call.1} parent=1 // pred_check
      _
    $region11: #{tpu_custom_call.1} parent=1 // pred_check_branch
      %24 = sbr.rel (0) target = $region13
    $region12: #{tpu_custom_call.1} parent=1 // pred_region
      %25 = dma.done [#allocation3], 256
    $region13: #{tpu_custom_call.1} parent=1 // pred_fallthru
      _
    %v26 = vld [vmem:[#allocation2] sm:$0xff]
    %v27 = vld [vmem:[#allocation2 + $0x8] sm:$0xff]
    %v28 = vld [vmem:[%s1] sm:$0x1]
    %v29 = vld [vmem:[%s1 + $0x1] sm:$0x1]
    %v32 = vlaneseq
    %v33 = vshrl.u32 %v32, 7
    %v34 = vsub.s32 0, %v33
    %v35 = vrot.slane %v28, %v34
    %v36 = vlaneseq
    %v37 = vshrl.u32 %v36, 7
    %v38 = vsub.s32 0, %v37
    %v39 = vrot.slane %v29, %v38
    %v42 = vmul.f32 %v26, %v35
    %v43 = vmul.f32 %v27, %v39
    %44 = vst [vmem:[#allocation5] sm:$0xff] %v42
    %45 = vst [vmem:[#allocation5 + $0x8] sm:$0xff] %v43
    // Predicated region
    $region14: #{tpu_custom_call.1} parent=1 // pred_check
      _
    $region15: #{tpu_custom_call.1} parent=1 // pred_check_branch
      %47 = sbr.rel (0) target = $region17
    $region16: #{tpu_custom_call.1} parent=1 // pred_region
      %s49 = ssub.s32 256, 256
      %50 = vsyncadd [#allocation4], %s49
      %s51 = sshll.u32 [#allocation5], 4
      %s52 = int_to_ptr.vmem [resolvable:$true] %s51
      %57 = dma.vmem_to_hbm [thread:$0]  %s52, 256, %s2, [#allocation4], 128, 128, 8
    $region17: #{tpu_custom_call.1} parent=1 // pred_fallthru
      _
    // Predicated region
    $region18: #{tpu_custom_call.1} parent=1 // pred_check
      _
    $region19: #{tpu_custom_call.1} parent=1 // pred_check_branch
      %59 = sbr.rel (0) target = $region21
    $region20: #{tpu_custom_call.1} parent=1 // pred_region
      %60 = dma.done [#allocation4], 256
    $region21: #{tpu_custom_call.1} parent=1 // pred_fallthru
      _
    %61 = vsyncpa [#allocation3], 1
    %62 = vsyncpa [#allocation4], 1

</llo_original>
